<compile_context>
chip_gen: v7x
topology: tpu7x:2x2x1
jax: 0.10.0
libtpu: 0.0.40
codegen_flags: <defaults>
</compile_context>

<pallas_src>
import functools

import jax
import jax.numpy as jnp
from jax.experimental import pallas as pl
from jax.experimental.pallas import tpu as pltpu


MXU_DTYPE = jnp.bfloat16      # MXU operand dtype; all accumulation stays f32

_SORT_K = 30                  # SortAggregation k  -> conv5 output length
_T_POOL = 15                  # after MaxPool1d(2, 2)
_CONV6_K = 5                  # conv6 kernel size
_T_CONV6 = 11                 # 15 - 5 + 1
_FC1_IN = _T_CONV6 * 32       # 352


# ----------------------------------------------------------------------------
# Helpers
# ----------------------------------------------------------------------------
def _full_spec(shape):
    # Full-array block (allowed regardless of (8,128) alignment).
    nd = len(shape)
    return pl.BlockSpec(shape, lambda i, _nd=nd: (0,) * _nd)


# ----------------------------------------------------------------------------
# Fused GCN stack kernel: x_l = tanh(A @ (h @ W_l) + b_l), l=1..4, concat
# ----------------------------------------------------------------------------
def _gcn_stack_kernel(a_ref, x_ref, w_ref, b_ref, o_ref):
    a = a_ref[...]                                   # [N, N] bf16, read once

    def layer(h_bf16, l):
        w = w_ref[32 * l:32 * (l + 1), :]            # [32, 32] bf16 slab slice
        hw = jnp.dot(h_bf16, w, preferred_element_type=jnp.float32)
        agg = jnp.dot(a, hw.astype(MXU_DTYPE),
                      preferred_element_type=jnp.float32)
        return jnp.tanh(agg + b_ref[l:l + 1, :])     # bias + tanh in f32

    x1 = layer(x_ref[...], 0)                        # [N, 32]
    x2 = layer(x1.astype(MXU_DTYPE), 1)              # [N, 32]
    x3 = layer(x2.astype(MXU_DTYPE), 2)              # [N, 32]
    x4 = layer(x3.astype(MXU_DTYPE), 3)              # [N, 32]; cols 1..31 == 0

    # Single unmasked lane-dense [N, 128] store: [x1 | x2 | x3 | x4(+pad)].
    o_ref[...] = jnp.concatenate([x1, x2, x3, x4], axis=-1)


def gcn_stack(a_norm, x_pad, w_slab, bias_slab):
    n = x_pad.shape[0]
    args = (a_norm, x_pad, w_slab, bias_slab)
    flops = 4 * (2 * n * 32 * 32 + 2 * n * n * 32)
    cost = pl.CostEstimate(
        flops=int(flops),
        transcendentals=int(4 * n * 32),
        bytes_accessed=int(sum(a.size * a.dtype.itemsize for a in args)
                           + n * 128 * 4),
    )
    return pl.pallas_call(
        _gcn_stack_kernel,
        out_shape=jax.ShapeDtypeStruct((n, 128), jnp.float32),
        grid=(1,),
        in_specs=[_full_spec(a.shape) for a in args],
        out_specs=_full_spec((n, 128)),
        compiler_params=pltpu.CompilerParams(dimension_semantics=("arbitrary",)),
        cost_estimate=cost,
    )(*args)


# ----------------------------------------------------------------------------
# Fused head kernel: conv5 + ReLU + MaxPool1d(2,2) + conv6 + ReLU + fc1 + fc2
# Row layout of time-major activations is (time, graph): row = t*B + b.
# ----------------------------------------------------------------------------
def _head_kernel(p_ref, w5_ref, w6_ref, wc1_ref, wc2_ref, bias_ref, o_ref,
                 *, batch):
    b = batch
    half = _T_POOL * b                               # rows per pooling phase

    # conv5 + ReLU on both pooling phases with ONE matmul; p_ref rows
    # [0:half] are even time steps (t=0,2,..), [half:2*half] odd (t=1,3,..).
    x5_all = jnp.dot(p_ref[...], w5_ref[...], preferred_element_type=jnp.float32)
    x5_all = jnp.maximum(x5_all + bias_ref[0:1, 0:16], 0.0)      # [2*half, 16]
    # MaxPool1d(2, 2) == elementwise max of the two phases.
    x5 = jnp.maximum(x5_all[0:half, :], x5_all[half:2 * half, :])  # [15B, 16]

    # conv6 (Conv1d(16,32,5,1)) + ReLU as ONE im2col matmul:
    # lhs column tau*16 + ic == x5[(t+tau)*B + b, ic];  w6_ref is [80, 32].
    lhs6 = jnp.concatenate(
        [x5[tau * b:(tau + _T_CONV6) * b, :] for tau in range(_CONV6_K)],
        axis=-1)                                                  # [11B, 80]
    x6 = jnp.dot(lhs6.astype(MXU_DTYPE), w6_ref[...],
                 preferred_element_type=jnp.float32)
    x6 = jnp.maximum(x6 + bias_ref[1:2, 0:32], 0.0)               # [11B, 32]

    # classifier_1 + ReLU as ONE matmul.  PyTorch's channel-major .view(B,-1)
    # flatten is folded into wc1_ref (row t*32+ch == original row ch*11+t).
    lhs1 = jnp.concatenate(
        [x6[t * b:(t + 1) * b, :] for t in range(_T_CONV6)], axis=-1)  # [B, 352]
    h = jnp.dot(lhs1.astype(MXU_DTYPE), wc1_ref[...],
                preferred_element_type=jnp.float32)
    h = jnp.maximum(h + bias_ref[2:3, 0:256], 0.0)                # [B, 256]
    # TODO(synk): Dropout(0.5) treated as identity (inference mode); training
    # dropout would use pltpu.prng_seed/prng_random_bits here.

    # classifier_2, lane-dense (wc2/bc2 zero-padded to 128 columns).
    o_ref[...] = (jnp.dot(h.astype(MXU_DTYPE), wc2_ref[...],
                          preferred_element_type=jnp.float32)
                  + bias_ref[3:4, 0:128])


def dgcnn_head(pstk, w5p, w6r, wc1p, wc2p, bias_slab, *, batch):
    args = (pstk, w5p, w6r, wc1p, wc2p, bias_slab)
    flops = (2 * (2 * _T_POOL * batch) * 128 * 16        # conv5 (both phases)
             + 2 * (_T_CONV6 * batch) * 80 * 32          # conv6 (im2col)
             + 2 * batch * _FC1_IN * 256                 # fc1
             + 2 * batch * 256 * 128)                    # fc2 (padded)
    cost = pl.CostEstimate(
        flops=int(flops),
        transcendentals=0,
        bytes_accessed=int(sum(a.size * a.dtype.itemsize for a in args)
                           + batch * 128 * 4),
    )
    kern = functools.partial(_head_kernel, batch=batch)
    return pl.pallas_call(
        kern,
        out_shape=jax.ShapeDtypeStruct((batch, 128), jnp.float32),
        grid=(1,),
        in_specs=[_full_spec(a.shape) for a in args],
        out_specs=_full_spec((batch, 128)),
        compiler_params=pltpu.CompilerParams(dimension_semantics=("arbitrary",)),
        cost_estimate=cost,
    )(*args)


# ----------------------------------------------------------------------------
# JAX glue: graph preprocessing + sort pooling (single gather)
# ----------------------------------------------------------------------------
def build_gcn_adjacency(edge_index, num_nodes):
    """remove_self_loops + GCNConv's add_self_loops + symmetric normalization,
    materialized as a dense [N, N] operator consumed ONCE by the fused kernel."""
    src, dst = edge_index[0], edge_index[1]
    a = jnp.zeros((num_nodes, num_nodes), jnp.float32)
    a = a.at[dst, src].set(1.0)            # message flow src -> dst
    eye = jnp.eye(num_nodes, dtype=jnp.float32)
    a = a * (1.0 - eye)                    # remove_self_loops
    a = a + eye                            # GCNConv adds self loops back
    deg = jnp.sum(a, axis=1)               # in-degree (incl. self loop)
    dinv = jax.lax.rsqrt(jnp.maximum(deg, 1e-12))
    return a * dinv[:, None] * dinv[None, :]


def build_sorted_conv5_input(gcn_out, num_graphs, nodes_per_graph, k, sort_col):
    """SortAggregation(k) + time-major reorder + even/odd de-interleave, fused
    into ONE gather.  Returns [k * B, D]: rows [0 : k/2*B] are even time steps
    (t = 0,2,...) in (time, graph) order, rows [k/2*B :] are odd time steps.
    Per-graph descending sort by feature `sort_col`, top-k, zero-pad to k
    (equal-size graphs assumed)."""
    n, d = gcn_out.shape
    vals = gcn_out[:, sort_col].reshape(num_graphs, nodes_per_graph)
    order = jnp.argsort(-vals, axis=1).astype(jnp.int32)          # descending
    base = (jnp.arange(num_graphs, dtype=jnp.int32) * nodes_per_graph)[:, None]
    node_idx = base + order                                       # [B, npg]
    if nodes_per_graph >= k:
        node_idx = node_idx[:, :k]
    else:                                  # pad positions point at the zero row
        pad = jnp.full((num_graphs, k - nodes_per_graph), n, dtype=jnp.int32)
        node_idx = jnp.concatenate([node_idx, pad], axis=1)       # [B, k]
    node_idx_t = node_idx.T                                       # [k, B]
    gather_idx = jnp.concatenate(
        [node_idx_t[0::2].reshape(-1), node_idx_t[1::2].reshape(-1)], axis=0)
    gcn_pad = jnp.concatenate(
        [gcn_out, jnp.zeros((1, d), gcn_out.dtype)], axis=0)
    return jnp.take(gcn_pad, gather_idx, axis=0)                  # [k*B, D]


# ----------------------------------------------------------------------------
# Parameters + forward
# ----------------------------------------------------------------------------
def init_params(key, num_features, num_classes):
    keys = jax.random.split(key, 16)

    def w(k, shape, scale=0.1):
        return scale * jax.random.normal(k, shape, dtype=jnp.float32)

    return {
        # GCNConv layers: weight [in, out], bias [1, out]
        "w1": w(keys[0], (num_features, 32)), "b1": w(keys[1], (1, 32)),
        "w2": w(keys[2], (32, 32)),           "b2": w(keys[3], (1, 32)),
        "w3": w(keys[4], (32, 32)),           "b3": w(keys[5], (1, 32)),
        "w4": w(keys[6], (32, 1)),            "b4": w(keys[7], (1, 1)),
        # Conv1d(1, 16, 97, 97): matmul weight [97, 16]
        "w5": w(keys[8], (97, 16)),           "b5": w(keys[9], (1, 16)),
        # Conv1d(16, 32, 5, 1): weight [tap, in_ch, out_ch] = [5, 16, 32]
        "w6": w(keys[10], (5, 16, 32)),       "b6": w(keys[11], (1, 32)),
        # Linear(352, 256), Linear(256, num_classes)
        "wc1": w(keys[12], (_FC1_IN, 256)),   "bc1": w(keys[13], (1, 256)),
        "wc2": w(keys[14], (256, num_classes)), "bc2": w(keys[15], (1, num_classes)),
    }


def dgcnn_forward(params, x, edge_index, batch, num_graphs, nodes_per_graph,
                  num_classes):
    del batch  # equal-size graphs assumed; graph membership implied by layout
    n, f = x.shape
    assert f <= 32 and num_classes <= 128 and _SORT_K % 2 == 0
    a_norm = build_gcn_adjacency(edge_index, n)

    # --- pack GCN operands (one-time, tiny XLA ops) -------------------------
    # Pad w1 to 32 rows / x to 32 cols (zero rows x zero cols contribute 0) and
    # conv4 to 32 output lanes (pad stays exactly 0 through tanh), so the whole
    # weight stack is ONE 32-aligned [128, 32] slab and biases ONE [4, 32] slab.
    w1p = jnp.pad(params["w1"], ((0, 32 - f), (0, 0)))
    w4p = jnp.pad(params["w4"], ((0, 0), (0, 31)))
    b4p = jnp.pad(params["b4"], ((0, 0), (0, 31)))
    w_slab = jnp.concatenate([w1p, params["w2"], params["w3"], w4p], axis=0)
    bias_slab = jnp.concatenate(
        [params["b1"], params["b2"], params["b3"], b4p], axis=0)   # [4, 32] f32
    x_pad = jnp.pad(x, ((0, 0), (0, 32 - f)))

    gcn_out = gcn_stack(a_norm.astype(MXU_DTYPE), x_pad.astype(MXU_DTYPE),
                        w_slab.astype(MXU_DTYPE), bias_slab)       # [N, 128] f32

    # --- sort pooling (x_4 channel = col 96) as ONE gather -------------------
    pstk = build_sorted_conv5_input(gcn_out, num_graphs, nodes_per_graph,
                                    _SORT_K, sort_col=96)          # [30*B, 128]
    b = num_graphs

    # --- pack head operands (one-time weight padding / permutation) ----------
    w5p = jnp.pad(params["w5"], ((0, 128 - 97), (0, 0)))           # [128, 16]
    w6r = params["w6"].reshape(_CONV6_K * 16, 32)                  # [80, 32]
    # Fold PyTorch's channel-major flatten: row t*32+ch <- wc1 row ch*11+t.
    wc1p = (params["wc1"].reshape(32, _T_CONV6, 256)
            .transpose(1, 0, 2).reshape(_FC1_IN, 256))             # [352, 256]
    wc2p = jnp.pad(params["wc2"], ((0, 0), (0, 128 - num_classes)))  # [256, 128]
    hbias = jnp.zeros((4, 256), jnp.float32)
    hbias = hbias.at[0, :16].set(params["b5"][0])
    hbias = hbias.at[1, :32].set(params["b6"][0])
    hbias = hbias.at[2, :256].set(params["bc1"][0])
    hbias = hbias.at[3, :num_classes].set(params["bc2"][0])

    logits_pad = dgcnn_head(pstk.astype(MXU_DTYPE), w5p.astype(MXU_DTYPE),
                            w6r.astype(MXU_DTYPE), wc1p.astype(MXU_DTYPE),
                            wc2p.astype(MXU_DTYPE), hbias, batch=b)  # [B, 128]
    return logits_pad[:, :num_classes]


# ----------------------------------------------------------------------------
# Main
# ----------------------------------------------------------------------------
if __name__ == "__main__":
    num_graphs = 2
    nodes_per_graph = 16
    num_features = 4
    num_classes = 3
    num_nodes = num_graphs * nodes_per_graph

    key = jax.random.PRNGKey(0)
    k_x, k_p = jax.random.split(key)

    # Node features
    x = jax.random.normal(k_x, (num_nodes, num_features), dtype=jnp.float32)

    # Bidirectional ring within each graph + one self loop per graph
    # (self loops get removed by remove_self_loops in the forward).
    edges = []
    for g in range(num_graphs):
        base = g * nodes_per_graph
        for i in range(nodes_per_graph):
            j = (i + 1) % nodes_per_graph
            edges.append((base + i, base + j))
            edges.append((base + j, base + i))
        edges.append((base, base))
    edge_index = jnp.array(edges, dtype=jnp.int32).T          # [2, 66]
    batch = jnp.repeat(jnp.arange(num_graphs, dtype=jnp.int32), nodes_per_graph)

    params = init_params(k_p, num_features, num_classes)

    logits = dgcnn_forward(params, x, edge_index, batch,
                           num_graphs, nodes_per_graph, num_classes)
    logits = jax.block_until_ready(logits)
    assert logits.shape == (num_graphs, num_classes)
    assert bool(jnp.all(jnp.isfinite(logits)))
    print("KERNEL_OK")
</pallas_src>

<mosaic_0001>
module attributes {stable_mosaic.version = 11 : i64} {
  func.func @_gcn_stack_kernel(%arg0: i32, %arg1: memref<32x32xbf16, #tpu.memory_space<vmem>>, %arg2: memref<32x32xbf16, #tpu.memory_space<vmem>>, %arg3: memref<128x32xbf16, #tpu.memory_space<vmem>>, %arg4: memref<4x32xf32, #tpu.memory_space<vmem>>, %arg5: memref<32x128xf32, #tpu.memory_space<vmem>>) attributes {dimension_semantics = [#tpu.dimension_semantics<arbitrary>], iteration_bounds = array<i64: 1>, scalar_prefetch = 0 : i64, scratch_operands = 0 : i64, tpu.core_type = #tpu.core_type<tc>, window_params = [{pipeline_mode = #tpu.pipeline_mode<synchronous>, transform_indices = @transform_0, window_bounds = array<i64: 32, 32>}, {pipeline_mode = #tpu.pipeline_mode<synchronous>, transform_indices = @transform_1, window_bounds = array<i64: 32, 32>}, {pipeline_mode = #tpu.pipeline_mode<synchronous>, transform_indices = @transform_2, window_bounds = array<i64: 128, 32>}, {pipeline_mode = #tpu.pipeline_mode<synchronous>, transform_indices = @transform_3, window_bounds = array<i64: 4, 32>}, {pipeline_mode = #tpu.pipeline_mode<synchronous>, transform_indices = @transform_4, window_bounds = array<i64: 32, 128>}]} {
    %c0 = arith.constant 0 : index
    %c0_0 = arith.constant 0 : index
    %0 = vector.load %arg1[%c0, %c0_0] : memref<32x32xbf16, #tpu.memory_space<vmem>>, vector<32x32xbf16>
    %c0_1 = arith.constant 0 : index
    %c0_2 = arith.constant 0 : index
    %1 = vector.load %arg2[%c0_1, %c0_2] : memref<32x32xbf16, #tpu.memory_space<vmem>>, vector<32x32xbf16>
    %c0_3 = arith.constant 0 : index
    %c0_4 = arith.constant 0 : index
    %2 = vector.load %arg3[%c0_3, %c0_4] : memref<128x32xbf16, #tpu.memory_space<vmem>>, vector<32x32xbf16>
    %cst = arith.constant dense<0.000000e+00> : vector<32x32xf32>
    %3 = tpu.matmul %1, %2, %cst {dimension_numbers = #tpu.dot_dimension_numbers<[1], [0], [0], [1], [0, 0, 1, 1], [], []>} : vector<32x32xbf16>, vector<32x32xbf16>, vector<32x32xf32> -> vector<32x32xf32>
    %4 = arith.truncf %3 : vector<32x32xf32> to vector<32x32xbf16>
    %cst_5 = arith.constant dense<0.000000e+00> : vector<32x32xf32>
    %5 = tpu.matmul %0, %4, %cst_5 {dimension_numbers = #tpu.dot_dimension_numbers<[1], [0], [0], [1], [0, 0, 1, 1], [], []>} : vector<32x32xbf16>, vector<32x32xbf16>, vector<32x32xf32> -> vector<32x32xf32>
    %c0_6 = arith.constant 0 : index
    %c0_7 = arith.constant 0 : index
    %6 = vector.load %arg4[%c0_6, %c0_7] : memref<4x32xf32, #tpu.memory_space<vmem>>, vector<1x32xf32>
    %7 = vector.broadcast %6 : vector<1x32xf32> to vector<32x32xf32>
    %8 = arith.addf %5, %7 : vector<32x32xf32>
    %9 = math.tanh %8 : vector<32x32xf32>
    %10 = arith.truncf %9 : vector<32x32xf32> to vector<32x32xbf16>
    %c32 = arith.constant 32 : index
    %c0_8 = arith.constant 0 : index
    %11 = vector.load %arg3[%c32, %c0_8] : memref<128x32xbf16, #tpu.memory_space<vmem>>, vector<32x32xbf16>
    %cst_9 = arith.constant dense<0.000000e+00> : vector<32x32xf32>
    %12 = tpu.matmul %10, %11, %cst_9 {dimension_numbers = #tpu.dot_dimension_numbers<[1], [0], [0], [1], [0, 0, 1, 1], [], []>} : vector<32x32xbf16>, vector<32x32xbf16>, vector<32x32xf32> -> vector<32x32xf32>
    %13 = arith.truncf %12 : vector<32x32xf32> to vector<32x32xbf16>
    %cst_10 = arith.constant dense<0.000000e+00> : vector<32x32xf32>
    %14 = tpu.matmul %0, %13, %cst_10 {dimension_numbers = #tpu.dot_dimension_numbers<[1], [0], [0], [1], [0, 0, 1, 1], [], []>} : vector<32x32xbf16>, vector<32x32xbf16>, vector<32x32xf32> -> vector<32x32xf32>
    %c1 = arith.constant 1 : index
    %c0_11 = arith.constant 0 : index
    %15 = vector.load %arg4[%c1, %c0_11] : memref<4x32xf32, #tpu.memory_space<vmem>>, vector<1x32xf32>
    %16 = vector.broadcast %15 : vector<1x32xf32> to vector<32x32xf32>
    %17 = arith.addf %14, %16 : vector<32x32xf32>
    %18 = math.tanh %17 : vector<32x32xf32>
    %19 = arith.truncf %18 : vector<32x32xf32> to vector<32x32xbf16>
    %c64 = arith.constant 64 : index
    %c0_12 = arith.constant 0 : index
    %20 = vector.load %arg3[%c64, %c0_12] : memref<128x32xbf16, #tpu.memory_space<vmem>>, vector<32x32xbf16>
    %cst_13 = arith.constant dense<0.000000e+00> : vector<32x32xf32>
    %21 = tpu.matmul %19, %20, %cst_13 {dimension_numbers = #tpu.dot_dimension_numbers<[1], [0], [0], [1], [0, 0, 1, 1], [], []>} : vector<32x32xbf16>, vector<32x32xbf16>, vector<32x32xf32> -> vector<32x32xf32>
    %22 = arith.truncf %21 : vector<32x32xf32> to vector<32x32xbf16>
    %cst_14 = arith.constant dense<0.000000e+00> : vector<32x32xf32>
    %23 = tpu.matmul %0, %22, %cst_14 {dimension_numbers = #tpu.dot_dimension_numbers<[1], [0], [0], [1], [0, 0, 1, 1], [], []>} : vector<32x32xbf16>, vector<32x32xbf16>, vector<32x32xf32> -> vector<32x32xf32>
    %c2 = arith.constant 2 : index
    %c0_15 = arith.constant 0 : index
    %24 = vector.load %arg4[%c2, %c0_15] : memref<4x32xf32, #tpu.memory_space<vmem>>, vector<1x32xf32>
    %25 = vector.broadcast %24 : vector<1x32xf32> to vector<32x32xf32>
    %26 = arith.addf %23, %25 : vector<32x32xf32>
    %27 = math.tanh %26 : vector<32x32xf32>
    %28 = arith.truncf %27 : vector<32x32xf32> to vector<32x32xbf16>
    %c96 = arith.constant 96 : index
    %c0_16 = arith.constant 0 : index
    %29 = vector.load %arg3[%c96, %c0_16] : memref<128x32xbf16, #tpu.memory_space<vmem>>, vector<32x32xbf16>
    %cst_17 = arith.constant dense<0.000000e+00> : vector<32x32xf32>
    %30 = tpu.matmul %28, %29, %cst_17 {dimension_numbers = #tpu.dot_dimension_numbers<[1], [0], [0], [1], [0, 0, 1, 1], [], []>} : vector<32x32xbf16>, vector<32x32xbf16>, vector<32x32xf32> -> vector<32x32xf32>
    %31 = arith.truncf %30 : vector<32x32xf32> to vector<32x32xbf16>
    %cst_18 = arith.constant dense<0.000000e+00> : vector<32x32xf32>
    %32 = tpu.matmul %0, %31, %cst_18 {dimension_numbers = #tpu.dot_dimension_numbers<[1], [0], [0], [1], [0, 0, 1, 1], [], []>} : vector<32x32xbf16>, vector<32x32xbf16>, vector<32x32xf32> -> vector<32x32xf32>
    %c3 = arith.constant 3 : index
    %c0_19 = arith.constant 0 : index
    %33 = vector.load %arg4[%c3, %c0_19] : memref<4x32xf32, #tpu.memory_space<vmem>>, vector<1x32xf32>
    %34 = vector.broadcast %33 : vector<1x32xf32> to vector<32x32xf32>
    %35 = arith.addf %32, %34 : vector<32x32xf32>
    %36 = math.tanh %35 : vector<32x32xf32>
    %37 = tpu.concatenate %9, %18, %27, %36 in 1 : vector<32x32xf32>, vector<32x32xf32>, vector<32x32xf32>, vector<32x32xf32> -> vector<32x128xf32>
    %c0_20 = arith.constant 0 : index
    %c0_21 = arith.constant 0 : index
    %38 = vector.load %arg5[%c0_20, %c0_21] : memref<32x128xf32, #tpu.memory_space<vmem>>, vector<32x128xf32>
    tpu.vector_store %arg5[%c0_20, %c0_21], %37 {strides = array<i32>} : memref<32x128xf32, #tpu.memory_space<vmem>>, vector<32x128xf32>,
    return
  }
  func.func @transform_0(%arg0: i32) -> (i32, i32) {
    %c0_i32 = arith.constant 0 : i32
    %c0_i32_0 = arith.constant 0 : i32
    %c0_i32_1 = arith.constant 0 : i32
    return %c0_i32, %c0_i32_0 : i32, i32
  }
  func.func @transform_1(%arg0: i32) -> (i32, i32) {
    %c0_i32 = arith.constant 0 : i32
    %c0_i32_0 = arith.constant 0 : i32
    %c0_i32_1 = arith.constant 0 : i32
    return %c0_i32, %c0_i32_0 : i32, i32
  }
  func.func @transform_2(%arg0: i32) -> (i32, i32) {
    %c0_i32 = arith.constant 0 : i32
    %c0_i32_0 = arith.constant 0 : i32
    %c0_i32_1 = arith.constant 0 : i32
    return %c0_i32, %c0_i32_0 : i32, i32
  }
  func.func @transform_3(%arg0: i32) -> (i32, i32) {
    %c0_i32 = arith.constant 0 : i32
    %c0_i32_0 = arith.constant 0 : i32
    %c0_i32_1 = arith.constant 0 : i32
    return %c0_i32, %c0_i32_0 : i32, i32
  }
  func.func @transform_4(%arg0: i32) -> (i32, i32) {
    %c0_i32 = arith.constant 0 : i32
    %c0_i32_0 = arith.constant 0 : i32
    %c0_i32_1 = arith.constant 0 : i32
    return %c0_i32, %c0_i32_0 : i32, i32
  }
}

</mosaic_0001>

<llo_original>
// kernel: tpu_custom_call.1
$region0: #{tpu_custom_call.1}
  #allocation0 [shape = 'u32[]', space=smem, size = 0x4, offset = 0x4, fixed_abs, tag = 'smem constant byte address 0x4 - core index']
  #allocation1 [shape = 'u32[144,128]{1,0:T(1,128)}', space=vmem, size = 0x12000, scoped, tag = 'internal scratch']
  %s0 = inlined_call_operand.vmem [shape: bf16[32,32], index: 0, kind: input, shape index: {}]
  %s1 = inlined_call_operand.vmem [shape: bf16[32,32], index: 1, kind: input, shape index: {}]
  %s2 = inlined_call_operand.vmem [shape: bf16[128,32], index: 2, kind: input, shape index: {}]
  %s3 = inlined_call_operand.vmem [shape: f32[4,32], index: 3, kind: input, shape index: {}]
  %s4 = inlined_call_operand.hbm [shape: f32[32,128], index: 4, kind: output, shape index: {}]
  %s5 = sld [smem:[#allocation0]]
  $region26: #{tpu_custom_call.1} parent=0
    _
  %s7 = ssub.s32 1, %s5
  %s8 = scalar_select 0, %s7, %s5
  $region1: #{tpu_custom_call.1} parent=0
    #allocation2 [shape = 'u8[16384]{0}', space=vmem, size = 0x4000, scoped, tag = 'output window, operand 0, single buffered']
    #allocation3 [shape = 's32[1]{0}', space=sflag, size = 0x4, scoped, tag = 'scoped memory for tpu_custom_call.1']
    %9 = vsyncpa [#allocation3], 0
    // Predicated region
    $region2: #{tpu_custom_call.1} parent=1 // pred_check
      _
    $region3: #{tpu_custom_call.1} parent=1 // pred_check_branch
      %11 = sbr.rel (0) target = $region5
    $region4: #{tpu_custom_call.1} parent=1 // pred_region
      _
    $region5: #{tpu_custom_call.1} parent=1 // pred_fallthru
      _
    // Predicated region
    $region6: #{tpu_custom_call.1} parent=1 // pred_check
      _
    $region7: #{tpu_custom_call.1} parent=1 // pred_check_branch
      %13 = sbr.rel (0) target = $region9
    $region8: #{tpu_custom_call.1} parent=1 // pred_region
      _
    $region9: #{tpu_custom_call.1} parent=1 // pred_fallthru
      _
    // Predicated region
    $region10: #{tpu_custom_call.1} parent=1 // pred_check
      _
    $region11: #{tpu_custom_call.1} parent=1 // pred_check_branch
      %15 = sbr.rel (0) target = $region13
    $region12: #{tpu_custom_call.1} parent=1 // pred_region
      _
    $region13: #{tpu_custom_call.1} parent=1 // pred_fallthru
      _
    // Predicated region
    $region14: #{tpu_custom_call.1} parent=1 // pred_check
      _
    $region15: #{tpu_custom_call.1} parent=1 // pred_check_branch
      %17 = sbr.rel (0) target = $region17
    $region16: #{tpu_custom_call.1} parent=1 // pred_region
      _
    $region17: #{tpu_custom_call.1} parent=1 // pred_fallthru
      _
    %v19 = vld [vmem:[%s0] sm:$0xf]
    %v20 = vld [vmem:[%s0 + $0x4] sm:$0xf]
    %v21 = vld [vmem:[%s0 + $0x8] sm:$0xf]
    %v22 = vld [vmem:[%s0 + $0xc] sm:$0xf]
    %v23 = vld [vmem:[%s1] sm:$0xf]
    %v24 = vld [vmem:[%s1 + $0x4] sm:$0xf]
    %v25 = vld [vmem:[%s1 + $0x8] sm:$0xf]
    %v26 = vld [vmem:[%s1 + $0xc] sm:$0xf]
    %v27 = vld [vmem:[%s2] sm:$0xf]
    %v28 = vld [vmem:[%s2 + $0x4] sm:$0xf]
    %v29 = vld [vmem:[%s2 + $0x8] sm:$0xf]
    %v30 = vld [vmem:[%s2 + $0xc] sm:$0xf]
    %v35 = vunpack.c.l.b16 %v23
    %v36 = vunpack.c.l.b16 %v24
    %v37 = vunpack.c.l.b16 %v25
    %v38 = vunpack.c.l.b16 %v26
    %v39 = vpack.c.b16 %v36, %v35
    %v40 = vpack.c.b16 %v38, %v37
    %v45 = vunpack.c.l.b16 %v27
    %v46 = vunpack.c.l.b16 %v28
    %v47 = vunpack.c.l.b16 %v29
    %v48 = vunpack.c.l.b16 %v30
    %v49 = vpack.c.b16 %v46, %v45
    %v50 = vpack.c.b16 %v48, %v47
    %vm53 = vcmask 261120
    %v55 = vsel %vm53, %v39, 0
    %v58 = vsel %vm53, %v40, 0
    %60 = vmatprep.subr.bf16.mxu0 0
    %61 = vmatpush1.bf16.msra.mxu0 %v49
    %62 = vmatprep.subr.bf16.mxu0 0
    %63 = vmatpush1.bf16.msra.mxu0 %v50
    %64 = vmatprep.subr.bf16.mxu0 0
    %65 = vmatpush1.bf16.msra.mxu0 0
    %66 = vmatprep.subr.bf16.mxu0 0
    %67 = vmatpush1.bf16.msra.mxu0 0
    %68 = vmatprep.subr.bf16.mxu0 0
    %69 = vmatpush1.bf16.msra.mxu0 0
    %70 = vmatprep.subr.bf16.mxu0 0
    %71 = vmatpush1.bf16.msra.mxu0 0
    %72 = vmatprep.subr.bf16.mxu0 0
    %73 = vmatpush1.bf16.msra.mxu0 0
    %74 = vmatprep.subr.bf16.mxu0 0
    %75 = vmatpush1.bf16.msra.mxu0 0
    %76 = vmatprep.subr.bf16.mxu0 0
    %77 = vmatpush1.bf16.msra.mxu0 0
    %78 = vmatprep.subr.bf16.mxu0 0
    %79 = vmatpush1.bf16.msra.mxu0 0
    %80 = vmatprep.subr.bf16.mxu0 0
    %81 = vmatpush1.bf16.msra.mxu0 0
    %82 = vmatprep.subr.bf16.mxu0 0
    %83 = vmatpush1.bf16.msra.mxu0 0
    %84 = vmatprep.subr.bf16.mxu0 0
    %85 = vmatpush1.bf16.msra.mxu0 0
    %86 = vmatprep.subr.bf16.mxu0 0
    %87 = vmatpush1.bf16.msra.mxu0 0
    %88 = vmatprep.subr.bf16.mxu0 0
    %89 = vmatpush1.bf16.msra.mxu0 0
    %90 = vmatprep.subr.bf16.mxu0 0
    %91 = vmatpush1.bf16.msra.mxu0 0
    %92 = vmatprep.mubr.bf16.mxu0 0
    %93 = vmatmul.mubr.bf16.gmra.mrb[0].mxu0 %v55
    %v94 = vpop.f32.mrb[0].mxu0
    %v95 = vadd.f32 0.0, %v94
    %v96 = vpop.f32.mrb[0].mxu0
    %v97 = vpop.f32.mrb[0].mxu0
    %v98 = vadd.f32 0.0, %v97
    %v99 = vpop.f32.mrb[0].mxu0
    %100 = vmatprep.mubr.bf16.mxu0 0
    %101 = vmatmul.mubr.bf16.gmra.mrb[0].mxu0 %v58
    %v102 = vpop.f32.mrb[0].mxu0
    %v103 = vadd.f32 0.0, %v102
    %v104 = vpop.f32.mrb[0].mxu0
    %v105 = vpop.f32.mrb[0].mxu0
    %v106 = vadd.f32 0.0, %v105
    %v107 = vpop.f32.mrb[0].mxu0
    %108 = vdwg.mxu0
    %v109 = vpack.c.bf16 %v98, %v95
    %v110 = vpack.c.bf16 %v106, %v103
    %v111 = vld [vmem:[%s3] sm:$0x1]
    %v112 = vlaneseq
    %v113 = vshrl.u32 %v112, 7
    %v114 = vsub.s32 0, %v113
    %v115 = vrot.slane %v111, %v114
    %v120 = vunpack.c.l.b16 %v19
    %v121 = vunpack.c.l.b16 %v20
    %v122 = vunpack.c.l.b16 %v21
    %v123 = vunpack.c.l.b16 %v22
    %v124 = vpack.c.b16 %v121, %v120
    %v125 = vpack.c.b16 %v123, %v122
    %v127 = vsel %vm53, %v124, 0
    %v130 = vsel %vm53, %v125, 0
    %132 = vmatprep.subr.bf16.mxu0 0
    %133 = vmatpush1.bf16.msra.mxu0 %v109
    %134 = vmatprep.subr.bf16.mxu0 0
    %135 = vmatpush1.bf16.msra.mxu0 %v110
    %136 = vmatprep.subr.bf16.mxu0 0
    %137 = vmatpush1.bf16.msra.mxu0 0
    %138 = vmatprep.subr.bf16.mxu0 0
    %139 = vmatpush1.bf16.msra.mxu0 0
    %140 = vmatprep.subr.bf16.mxu0 0
    %141 = vmatpush1.bf16.msra.mxu0 0
    %142 = vmatprep.subr.bf16.mxu0 0
    %143 = vmatpush1.bf16.msra.mxu0 0
    %144 = vmatprep.subr.bf16.mxu0 0
    %145 = vmatpush1.bf16.msra.mxu0 0
    %146 = vmatprep.subr.bf16.mxu0 0
    %147 = vmatpush1.bf16.msra.mxu0 0
    %148 = vmatprep.subr.bf16.mxu0 0
    %149 = vmatpush1.bf16.msra.mxu0 0
    %150 = vmatprep.subr.bf16.mxu0 0
    %151 = vmatpush1.bf16.msra.mxu0 0
    %152 = vmatprep.subr.bf16.mxu0 0
    %153 = vmatpush1.bf16.msra.mxu0 0
    %154 = vmatprep.subr.bf16.mxu0 0
    %155 = vmatpush1.bf16.msra.mxu0 0
    %156 = vmatprep.subr.bf16.mxu0 0
    %157 = vmatpush1.bf16.msra.mxu0 0
    %158 = vmatprep.subr.bf16.mxu0 0
    %159 = vmatpush1.bf16.msra.mxu0 0
    %160 = vmatprep.subr.bf16.mxu0 0
    %161 = vmatpush1.bf16.msra.mxu0 0
    %162 = vmatprep.subr.bf16.mxu0 0
    %163 = vmatpush1.bf16.msra.mxu0 0
    %164 = vmatprep.mubr.bf16.mxu0 0
    %165 = vmatmul.mubr.bf16.gmra.mrb[0].mxu0 %v127
    %v166 = vpop.f32.mrb[0].mxu0
    %v167 = vadd.f32 %v115, %v166
    %v168 = vpop.f32.mrb[0].mxu0
    %v169 = vpop.f32.mrb[0].mxu0
    %v170 = vadd.f32 %v115, %v169
    %v171 = vpop.f32.mrb[0].mxu0
    %172 = vmatprep.mubr.bf16.mxu0 0
    %173 = vmatmul.mubr.bf16.gmra.mrb[0].mxu0 %v130
    %v174 = vpop.f32.mrb[0].mxu0
    %v175 = vadd.f32 %v115, %v174
    %v176 = vpop.f32.mrb[0].mxu0
    %v177 = vpop.f32.mrb[0].mxu0
    %v178 = vadd.f32 %v115, %v177
    %v179 = vpop.f32.mrb[0].mxu0
    %180 = vdwg.mxu0
    %v181 = vtanh.pop %v167
    %v182 = vtanh.pop %v170
    %v183 = vtanh.pop %v175
    %v184 = vtanh.pop %v178
    %v185 = vpack.c.bf16 %v182, %v181
    %v186 = vpack.c.bf16 %v184, %v183
    %v187 = vld [vmem:[%s2 + $0x10] sm:$0xf]
    %v188 = vld [vmem:[%s2 + $0x14] sm:$0xf]
    %v189 = vld [vmem:[%s2 + $0x18] sm:$0xf]
    %v190 = vld [vmem:[%s2 + $0x1c] sm:$0xf]
    %v195 = vunpack.c.l.b16 %v187
    %v196 = vunpack.c.l.b16 %v188
    %v197 = vunpack.c.l.b16 %v189
    %v198 = vunpack.c.l.b16 %v190
    %v199 = vpack.c.b16 %v196, %v195
    %v200 = vpack.c.b16 %v198, %v197
    %v204 = vsel %vm53, %v185, 0
    %v207 = vsel %vm53, %v186, 0
    %209 = vmatprep.subr.bf16.mxu0 0
    %210 = vmatpush1.bf16.msra.mxu0 %v199
    %211 = vmatprep.subr.bf16.mxu0 0
    %212 = vmatpush1.bf16.msra.mxu0 %v200
    %213 = vmatprep.subr.bf16.mxu0 0
    %214 = vmatpush1.bf16.msra.mxu0 0
    %215 = vmatprep.subr.bf16.mxu0 0
    %216 = vmatpush1.bf16.msra.mxu0 0
    %217 = vmatprep.subr.bf16.mxu0 0
    %218 = vmatpush1.bf16.msra.mxu0 0
    %219 = vmatprep.subr.bf16.mxu0 0
    %220 = vmatpush1.bf16.msra.mxu0 0
    %221 = vmatprep.subr.bf16.mxu0 0
    %222 = vmatpush1.bf16.msra.mxu0 0
    %223 = vmatprep.subr.bf16.mxu0 0
    %224 = vmatpush1.bf16.msra.mxu0 0
    %225 = vmatprep.subr.bf16.mxu0 0
    %226 = vmatpush1.bf16.msra.mxu0 0
    %227 = vmatprep.subr.bf16.mxu0 0
    %228 = vmatpush1.bf16.msra.mxu0 0
    %229 = vmatprep.subr.bf16.mxu0 0
    %230 = vmatpush1.bf16.msra.mxu0 0
    %231 = vmatprep.subr.bf16.mxu0 0
    %232 = vmatpush1.bf16.msra.mxu0 0
    %233 = vmatprep.subr.bf16.mxu0 0
    %234 = vmatpush1.bf16.msra.mxu0 0
    %235 = vmatprep.subr.bf16.mxu0 0
    %236 = vmatpush1.bf16.msra.mxu0 0
    %237 = vmatprep.subr.bf16.mxu0 0
    %238 = vmatpush1.bf16.msra.mxu0 0
    %239 = vmatprep.subr.bf16.mxu0 0
    %240 = vmatpush1.bf16.msra.mxu0 0
    %241 = vmatprep.mubr.bf16.mxu0 0
    %242 = vmatmul.mubr.bf16.gmra.mrb[0].mxu0 %v204
    %v243 = vpop.f32.mrb[0].mxu0
    %v244 = vadd.f32 0.0, %v243
    %v245 = vpop.f32.mrb[0].mxu0
    %v246 = vpop.f32.mrb[0].mxu0
    %v247 = vadd.f32 0.0, %v246
    %v248 = vpop.f32.mrb[0].mxu0
    %249 = vmatprep.mubr.bf16.mxu0 0
    %250 = vmatmul.mubr.bf16.gmra.mrb[0].mxu0 %v207
    %v251 = vpop.f32.mrb[0].mxu0
    %v252 = vadd.f32 0.0, %v251
    %v253 = vpop.f32.mrb[0].mxu0
    %v254 = vpop.f32.mrb[0].mxu0
    %v255 = vadd.f32 0.0, %v254
    %v256 = vpop.f32.mrb[0].mxu0
    %257 = vdwg.mxu0
    %v258 = vpack.c.bf16 %v247, %v244
    %v259 = vpack.c.bf16 %v255, %v252
    %v260 = vld [vmem:[%s3 + $0x1] sm:$0x1]
    %v261 = vlaneseq
    %v262 = vshrl.u32 %v261, 7
    %v263 = vsub.s32 0, %v262
    %v264 = vrot.slane %v260, %v263
    %265 = vmatprep.subr.bf16.mxu0 0
    %266 = vmatpush1.bf16.msra.mxu0 %v258
    %267 = vmatprep.subr.bf16.mxu0 0
    %268 = vmatpush1.bf16.msra.mxu0 %v259
    %269 = vmatprep.subr.bf16.mxu0 0
    %270 = vmatpush1.bf16.msra.mxu0 0
    %271 = vmatprep.subr.bf16.mxu0 0
    %272 = vmatpush1.bf16.msra.mxu0 0
    %273 = vmatprep.subr.bf16.mxu0 0
    %274 = vmatpush1.bf16.msra.mxu0 0
    %275 = vmatprep.subr.bf16.mxu0 0
    %276 = vmatpush1.bf16.msra.mxu0 0
    %277 = vmatprep.subr.bf16.mxu0 0
    %278 = vmatpush1.bf16.msra.mxu0 0
    %279 = vmatprep.subr.bf16.mxu0 0
    %280 = vmatpush1.bf16.msra.mxu0 0
    %281 = vmatprep.subr.bf16.mxu0 0
    %282 = vmatpush1.bf16.msra.mxu0 0
    %283 = vmatprep.subr.bf16.mxu0 0
    %284 = vmatpush1.bf16.msra.mxu0 0
    %285 = vmatprep.subr.bf16.mxu0 0
    %286 = vmatpush1.bf16.msra.mxu0 0
    %287 = vmatprep.subr.bf16.mxu0 0
    %288 = vmatpush1.bf16.msra.mxu0 0
    %289 = vmatprep.subr.bf16.mxu0 0
    %290 = vmatpush1.bf16.msra.mxu0 0
    %291 = vmatprep.subr.bf16.mxu0 0
    %292 = vmatpush1.bf16.msra.mxu0 0
    %293 = vmatprep.subr.bf16.mxu0 0
    %294 = vmatpush1.bf16.msra.mxu0 0
    %295 = vmatprep.subr.bf16.mxu0 0
    %296 = vmatpush1.bf16.msra.mxu0 0
    %297 = vmatprep.mubr.bf16.mxu0 0
    %298 = vmatmul.mubr.bf16.gmra.mrb[0].mxu0 %v127
    %v299 = vpop.f32.mrb[0].mxu0
    %v300 = vadd.f32 %v264, %v299
    %v301 = vpop.f32.mrb[0].mxu0
    %v302 = vpop.f32.mrb[0].mxu0
    %v303 = vadd.f32 %v264, %v302
    %v304 = vpop.f32.mrb[0].mxu0
    %305 = vmatprep.mubr.bf16.mxu0 0
    %306 = vmatmul.mubr.bf16.gmra.mrb[0].mxu0 %v130
    %v307 = vpop.f32.mrb[0].mxu0
    %v308 = vadd.f32 %v264, %v307
    %v309 = vpop.f32.mrb[0].mxu0
    %v310 = vpop.f32.mrb[0].mxu0
    %v311 = vadd.f32 %v264, %v310
    %v312 = vpop.f32.mrb[0].mxu0
    %313 = vdwg.mxu0
    %v314 = vtanh.pop %v300
    %v315 = vtanh.pop %v303
    %v316 = vtanh.pop %v308
    %v317 = vtanh.pop %v311
    %v318 = vpack.c.bf16 %v315, %v314
    %v319 = vpack.c.bf16 %v317, %v316
    %v320 = vld [vmem:[%s2 + $0x20] sm:$0xf]
    %v321 = vld [vmem:[%s2 + $0x24] sm:$0xf]
    %v322 = vld [vmem:[%s2 + $0x28] sm:$0xf]
    %v323 = vld [vmem:[%s2 + $0x2c] sm:$0xf]
    %v328 = vunpack.c.l.b16 %v320
    %v329 = vunpack.c.l.b16 %v321
    %v330 = vunpack.c.l.b16 %v322
    %v331 = vunpack.c.l.b16 %v323
    %v332 = vpack.c.b16 %v329, %v328
    %v333 = vpack.c.b16 %v331, %v330
    %v337 = vsel %vm53, %v318, 0
    %v340 = vsel %vm53, %v319, 0
    %342 = vmatprep.subr.bf16.mxu0 0
    %343 = vmatpush1.bf16.msra.mxu0 %v332
    %344 = vmatprep.subr.bf16.mxu0 0
    %345 = vmatpush1.bf16.msra.mxu0 %v333
    %346 = vmatprep.subr.bf16.mxu0 0
    %347 = vmatpush1.bf16.msra.mxu0 0
    %348 = vmatprep.subr.bf16.mxu0 0
    %349 = vmatpush1.bf16.msra.mxu0 0
    %350 = vmatprep.subr.bf16.mxu0 0
    %351 = vmatpush1.bf16.msra.mxu0 0
    %352 = vmatprep.subr.bf16.mxu0 0
    %353 = vmatpush1.bf16.msra.mxu0 0
    %354 = vmatprep.subr.bf16.mxu0 0
    %355 = vmatpush1.bf16.msra.mxu0 0
    %356 = vmatprep.subr.bf16.mxu0 0
    %357 = vmatpush1.bf16.msra.mxu0 0
    %358 = vmatprep.subr.bf16.mxu0 0
    %359 = vmatpush1.bf16.msra.mxu0 0
    %360 = vmatprep.subr.bf16.mxu0 0
    %361 = vmatpush1.bf16.msra.mxu0 0
    %362 = vmatprep.subr.bf16.mxu0 0
    %363 = vmatpush1.bf16.msra.mxu0 0
    %364 = vmatprep.subr.bf16.mxu0 0
    %365 = vmatpush1.bf16.msra.mxu0 0
    %366 = vmatprep.subr.bf16.mxu0 0
    %367 = vmatpush1.bf16.msra.mxu0 0
    %368 = vmatprep.subr.bf16.mxu0 0
    %369 = vmatpush1.bf16.msra.mxu0 0
    %370 = vmatprep.subr.bf16.mxu0 0
    %371 = vmatpush1.bf16.msra.mxu0 0
    %372 = vmatprep.subr.bf16.mxu0 0
    %373 = vmatpush1.bf16.msra.mxu0 0
    %374 = vmatprep.mubr.bf16.mxu0 0
    %375 = vmatmul.mubr.bf16.gmra.mrb[0].mxu0 %v337
    %v376 = vpop.f32.mrb[0].mxu0
    %v377 = vadd.f32 0.0, %v376
    %v378 = vpop.f32.mrb[0].mxu0
    %v379 = vpop.f32.mrb[0].mxu0
    %v380 = vadd.f32 0.0, %v379
    %v381 = vpop.f32.mrb[0].mxu0
    %382 = vmatprep.mubr.bf16.mxu0 0
    %383 = vmatmul.mubr.bf16.gmra.mrb[0].mxu0 %v340
    %v384 = vpop.f32.mrb[0].mxu0
    %v385 = vadd.f32 0.0, %v384
    %v386 = vpop.f32.mrb[0].mxu0
    %v387 = vpop.f32.mrb[0].mxu0
    %v388 = vadd.f32 0.0, %v387
    %v389 = vpop.f32.mrb[0].mxu0
    %390 = vdwg.mxu0
    %v391 = vpack.c.bf16 %v380, %v377
    %v392 = vpack.c.bf16 %v388, %v385
    %v393 = vld [vmem:[%s3 + $0x2] sm:$0x1]
    %v394 = vlaneseq
    %v395 = vshrl.u32 %v394, 7
    %v396 = vsub.s32 0, %v395
    %v397 = vrot.slane %v393, %v396
    %398 = vmatprep.subr.bf16.mxu0 0
    %399 = vmatpush1.bf16.msra.mxu0 %v391
    %400 = vmatprep.subr.bf16.mxu0 0
    %401 = vmatpush1.bf16.msra.mxu0 %v392
    %402 = vmatprep.subr.bf16.mxu0 0
    %403 = vmatpush1.bf16.msra.mxu0 0
    %404 = vmatprep.subr.bf16.mxu0 0
    %405 = vmatpush1.bf16.msra.mxu0 0
    %406 = vmatprep.subr.bf16.mxu0 0
    %407 = vmatpush1.bf16.msra.mxu0 0
    %408 = vmatprep.subr.bf16.mxu0 0
    %409 = vmatpush1.bf16.msra.mxu0 0
    %410 = vmatprep.subr.bf16.mxu0 0
    %411 = vmatpush1.bf16.msra.mxu0 0
    %412 = vmatprep.subr.bf16.mxu0 0
    %413 = vmatpush1.bf16.msra.mxu0 0
    %414 = vmatprep.subr.bf16.mxu0 0
    %415 = vmatpush1.bf16.msra.mxu0 0
    %416 = vmatprep.subr.bf16.mxu0 0
    %417 = vmatpush1.bf16.msra.mxu0 0
    %418 = vmatprep.subr.bf16.mxu0 0
    %419 = vmatpush1.bf16.msra.mxu0 0
    %420 = vmatprep.subr.bf16.mxu0 0
    %421 = vmatpush1.bf16.msra.mxu0 0
    %422 = vmatprep.subr.bf16.mxu0 0
    %423 = vmatpush1.bf16.msra.mxu0 0
    %424 = vmatprep.subr.bf16.mxu0 0
    %425 = vmatpush1.bf16.msra.mxu0 0
    %426 = vmatprep.subr.bf16.mxu0 0
    %427 = vmatpush1.bf16.msra.mxu0 0
    %428 = vmatprep.subr.bf16.mxu0 0
    %429 = vmatpush1.bf16.msra.mxu0 0
    %430 = vmatprep.mubr.bf16.mxu0 0
    %431 = vmatmul.mubr.bf16.gmra.mrb[0].mxu0 %v127
    %v432 = vpop.f32.mrb[0].mxu0
    %v433 = vadd.f32 %v397, %v432
    %v434 = vpop.f32.mrb[0].mxu0
    %v435 = vpop.f32.mrb[0].mxu0
    %v436 = vadd.f32 %v397, %v435
    %v437 = vpop.f32.mrb[0].mxu0
    %438 = vmatprep.mubr.bf16.mxu0 0
    %439 = vmatmul.mubr.bf16.gmra.mrb[0].mxu0 %v130
    %v440 = vpop.f32.mrb[0].mxu0
    %v441 = vadd.f32 %v397, %v440
    %v442 = vpop.f32.mrb[0].mxu0
    %v443 = vpop.f32.mrb[0].mxu0
    %v444 = vadd.f32 %v397, %v443
    %v445 = vpop.f32.mrb[0].mxu0
    %446 = vdwg.mxu0
    %v447 = vtanh.pop %v433
    %v448 = vtanh.pop %v436
    %v449 = vtanh.pop %v441
    %v450 = vtanh.pop %v444
    %v451 = vpack.c.bf16 %v448, %v447
    %v452 = vpack.c.bf16 %v450, %v449
    %v453 = vld [vmem:[%s2 + $0x30] sm:$0xf]
    %v454 = vld [vmem:[%s2 + $0x34] sm:$0xf]
    %v455 = vld [vmem:[%s2 + $0x38] sm:$0xf]
    %v456 = vld [vmem:[%s2 + $0x3c] sm:$0xf]
    %v461 = vunpack.c.l.b16 %v453
    %v462 = vunpack.c.l.b16 %v454
    %v463 = vunpack.c.l.b16 %v455
    %v464 = vunpack.c.l.b16 %v456
    %v465 = vpack.c.b16 %v462, %v461
    %v466 = vpack.c.b16 %v464, %v463
    %v470 = vsel %vm53, %v451, 0
    %v473 = vsel %vm53, %v452, 0
    %475 = vmatprep.subr.bf16.mxu0 0
    %476 = vmatpush1.bf16.msra.mxu0 %v465
    %477 = vmatprep.subr.bf16.mxu0 0
    %478 = vmatpush1.bf16.msra.mxu0 %v466
    %479 = vmatprep.subr.bf16.mxu0 0
    %480 = vmatpush1.bf16.msra.mxu0 0
    %481 = vmatprep.subr.bf16.mxu0 0
    %482 = vmatpush1.bf16.msra.mxu0 0
    %483 = vmatprep.subr.bf16.mxu0 0
    %484 = vmatpush1.bf16.msra.mxu0 0
    %485 = vmatprep.subr.bf16.mxu0 0
    %486 = vmatpush1.bf16.msra.mxu0 0
    %487 = vmatprep.subr.bf16.mxu0 0
    %488 = vmatpush1.bf16.msra.mxu0 0
    %489 = vmatprep.subr.bf16.mxu0 0
    %490 = vmatpush1.bf16.msra.mxu0 0
    %491 = vmatprep.subr.bf16.mxu0 0
    %492 = vmatpush1.bf16.msra.mxu0 0
    %493 = vmatprep.subr.bf16.mxu0 0
    %494 = vmatpush1.bf16.msra.mxu0 0
    %495 = vmatprep.subr.bf16.mxu0 0
    %496 = vmatpush1.bf16.msra.mxu0 0
    %497 = vmatprep.subr.bf16.mxu0 0
    %498 = vmatpush1.bf16.msra.mxu0 0
    %499 = vmatprep.subr.bf16.mxu0 0
    %500 = vmatpush1.bf16.msra.mxu0 0
    %501 = vmatprep.subr.bf16.mxu0 0
    %502 = vmatpush1.bf16.msra.mxu0 0
    %503 = vmatprep.subr.bf16.mxu0 0
    %504 = vmatpush1.bf16.msra.mxu0 0
    %505 = vmatprep.subr.bf16.mxu0 0
    %506 = vmatpush1.bf16.msra.mxu0 0
    %507 = vmatprep.mubr.bf16.mxu0 0
    %508 = vmatmul.mubr.bf16.gmra.mrb[0].mxu0 %v470
    %v509 = vpop.f32.mrb[0].mxu0
    %v510 = vadd.f32 0.0, %v509
    %v511 = vpop.f32.mrb[0].mxu0
    %v512 = vpop.f32.mrb[0].mxu0
    %v513 = vadd.f32 0.0, %v512
    %v514 = vpop.f32.mrb[0].mxu0
    %515 = vmatprep.mubr.bf16.mxu0 0
    %516 = vmatmul.mubr.bf16.gmra.mrb[0].mxu0 %v473
    %v517 = vpop.f32.mrb[0].mxu0
    %v518 = vadd.f32 0.0, %v517
    %v519 = vpop.f32.mrb[0].mxu0
    %v520 = vpop.f32.mrb[0].mxu0
    %v521 = vadd.f32 0.0, %v520
    %v522 = vpop.f32.mrb[0].mxu0
    %523 = vdwg.mxu0
    %v524 = vpack.c.bf16 %v513, %v510
    %v525 = vpack.c.bf16 %v521, %v518
    %v526 = vld [vmem:[%s3 + $0x3] sm:$0x1]
    %v527 = vlaneseq
    %v528 = vshrl.u32 %v527, 7
    %v529 = vsub.s32 0, %v528
    %v530 = vrot.slane %v526, %v529
    %531 = vmatprep.subr.bf16.mxu0 0
    %532 = vmatpush1.bf16.msra.mxu0 %v524
    %533 = vmatprep.subr.bf16.mxu0 0
    %534 = vmatpush1.bf16.msra.mxu0 %v525
    %535 = vmatprep.subr.bf16.mxu0 0
    %536 = vmatpush1.bf16.msra.mxu0 0
    %537 = vmatprep.subr.bf16.mxu0 0
    %538 = vmatpush1.bf16.msra.mxu0 0
    %539 = vmatprep.subr.bf16.mxu0 0
    %540 = vmatpush1.bf16.msra.mxu0 0
    %541 = vmatprep.subr.bf16.mxu0 0
    %542 = vmatpush1.bf16.msra.mxu0 0
    %543 = vmatprep.subr.bf16.mxu0 0
    %544 = vmatpush1.bf16.msra.mxu0 0
    %545 = vmatprep.subr.bf16.mxu0 0
    %546 = vmatpush1.bf16.msra.mxu0 0
    %547 = vmatprep.subr.bf16.mxu0 0
    %548 = vmatpush1.bf16.msra.mxu0 0
    %549 = vmatprep.subr.bf16.mxu0 0
    %550 = vmatpush1.bf16.msra.mxu0 0
    %551 = vmatprep.subr.bf16.mxu0 0
    %552 = vmatpush1.bf16.msra.mxu0 0
    %553 = vmatprep.subr.bf16.mxu0 0
    %554 = vmatpush1.bf16.msra.mxu0 0
    %555 = vmatprep.subr.bf16.mxu0 0
    %556 = vmatpush1.bf16.msra.mxu0 0
    %557 = vmatprep.subr.bf16.mxu0 0
    %558 = vmatpush1.bf16.msra.mxu0 0
    %559 = vmatprep.subr.bf16.mxu0 0
    %560 = vmatpush1.bf16.msra.mxu0 0
    %561 = vmatprep.subr.bf16.mxu0 0
    %562 = vmatpush1.bf16.msra.mxu0 0
    %563 = vmatprep.mubr.bf16.mxu0 0
    %564 = vmatmul.mubr.bf16.gmra.mrb[0].mxu0 %v127
    %v565 = vpop.f32.mrb[0].mxu0
    %v566 = vadd.f32 %v530, %v565
    %v567 = vpop.f32.mrb[0].mxu0
    %v568 = vpop.f32.mrb[0].mxu0
    %v569 = vadd.f32 %v530, %v568
    %v570 = vpop.f32.mrb[0].mxu0
    %571 = vmatprep.mubr.bf16.mxu0 0
    %572 = vmatmul.mubr.bf16.gmra.mrb[0].mxu0 %v130
    %v573 = vpop.f32.mrb[0].mxu0
    %v574 = vadd.f32 %v530, %v573
    %v575 = vpop.f32.mrb[0].mxu0
    %v576 = vpop.f32.mrb[0].mxu0
    %v577 = vadd.f32 %v530, %v576
    %v578 = vpop.f32.mrb[0].mxu0
    %579 = vdwg.mxu0
    %v580 = vtanh.pop %v566
    %v581 = vtanh.pop %v569
    %v582 = vtanh.pop %v574
    %v583 = vtanh.pop %v577
    %588 = vrot.lane.b32.xlu0 %v314, 32
    %v589 = vpop.permute.xlu0 %588
    %590 = vrot.lane.b32.xlu0 %v315, 32
    %v591 = vpop.permute.xlu0 %590
    %592 = vrot.lane.b32.xlu0 %v316, 32
    %v593 = vpop.permute.xlu0 %592
    %594 = vrot.lane.b32.xlu0 %v317, 32
    %v595 = vpop.permute.xlu0 %594
    %604 = vrot.lane.b32.xlu0 %v447, 64
    %v605 = vpop.permute.xlu0 %604
    %606 = vrot.lane.b32.xlu0 %v448, 64
    %v607 = vpop.permute.xlu0 %606
    %608 = vrot.lane.b32.xlu0 %v449, 64
    %v609 = vpop.permute.xlu0 %608
    %610 = vrot.lane.b32.xlu0 %v450, 64
    %v611 = vpop.permute.xlu0 %610
    %620 = vrot.lane.b32.xlu0 %v580, 96
    %v621 = vpop.permute.xlu0 %620
    %622 = vrot.lane.b32.xlu0 %v581, 96
    %v623 = vpop.permute.xlu0 %622
    %624 = vrot.lane.b32.xlu0 %v582, 96
    %v625 = vpop.permute.xlu0 %624
    %626 = vrot.lane.b32.xlu0 %v583, 96
    %v627 = vpop.permute.xlu0 %626
    %v632 = vsel %vm53, %v181, %v589
    %v633 = vsel %vm53, %v182, %v591
    %v634 = vsel %vm53, %v183, %v593
    %v635 = vsel %vm53, %v184, %v595
    %vm636 = vcmask 523264
    %v637 = vsel %vm636, %v632, %v605
    %v638 = vsel %vm636, %v633, %v607
    %v639 = vsel %vm636, %v634, %v609
    %v640 = vsel %vm636, %v635, %v611
    %vm641 = vcmask 785408
    %v642 = vsel %vm641, %v637, %v621
    %v643 = vsel %vm641, %v638, %v623
    %v644 = vsel %vm641, %v639, %v625
    %v645 = vsel %vm641, %v640, %v627
    %646 = vst [vmem:[#allocation2] sm:$0xff] %v642
    %647 = vst [vmem:[#allocation2 + $0x8] sm:$0xff] %v643
    %648 = vst [vmem:[#allocation2 + $0x10] sm:$0xff] %v644
    %649 = vst [vmem:[#allocation2 + $0x18] sm:$0xff] %v645
    // Predicated region
    $region18: #{tpu_custom_call.1} parent=1 // pred_check
      _
    $region19: #{tpu_custom_call.1} parent=1 // pred_check_branch
      %651 = sbr.rel (0) target = $region21
    $region20: #{tpu_custom_call.1} parent=1 // pred_region
      %s653 = ssub.s32 512, 512
      %654 = vsyncadd [#allocation3], %s653
      %s655 = sshll.u32 [#allocation2], 4
      %s656 = int_to_ptr.vmem [resolvable:$true] %s655
      %661 = dma.vmem_to_hbm [thread:$0]  %s656, 512, %s4, [#allocation3], 128, 128, 8
    $region21: #{tpu_custom_call.1} parent=1 // pred_fallthru
      _
    // Predicated region
    $region22: #{tpu_custom_call.1} parent=1 // pred_check
      _
    $region23: #{tpu_custom_call.1} parent=1 // pred_check_branch
      %663 = sbr.rel (0) target = $region25
    $region24: #{tpu_custom_call.1} parent=1 // pred_region
      %664 = dma.done [#allocation3], 512
    $region25: #{tpu_custom_call.1} parent=1 // pred_fallthru
      _
    %665 = vsyncpa [#allocation3], 1

</llo_original>
